<compile_context>
chip_gen: v7x
topology: tpu7x:2x2x1
jax: 0.10.0
libtpu: 0.0.40
codegen_flags: <defaults>
</compile_context>

<pallas_src>
import functools
import math

import jax
import jax.numpy as jnp
from jax.experimental import pallas as pl
from jax.experimental.pallas import tpu as pltpu


# --------------------------------------------------------------------------- #
# Kernels
# --------------------------------------------------------------------------- #
def _ffn_resident_kernel(x_ref, w1_ref, b1_ref, w2_ref, b2_ref, o_ref, *, compute_dtype):
    """One row tile with W1/W2 fully VMEM-resident: relu(x @ W1 + b1) @ W2 + b2."""
    x = x_ref[...].astype(compute_dtype)
    hid = jnp.dot(x, w1_ref[...], preferred_element_type=jnp.float32)
    hid = jnp.maximum(hid + b1_ref[...], 0.0)                       # bias + ReLU in f32
    out = jnp.dot(hid.astype(compute_dtype), w2_ref[...],
                  preferred_element_type=jnp.float32)
    # TODO(synk): nn.Dropout(p=0.1) is identity in eval mode; no RNG dropout applied.
    o_ref[...] = (out + b2_ref[...]).astype(o_ref.dtype)


def _ffn_streamed_kernel(x_ref, w1_ref, b1_ref, w2_ref, b2_ref, o_ref,
                         acc_ref, xb_ref, *, compute_dtype):
    """Fallback: hidden (4C) axis streamed in tiles; f32 accumulation across h."""
    h = pl.program_id(1)

    @pl.when(h == 0)
    def _():
        acc_ref[...] = jnp.zeros_like(acc_ref)
        # Hoisted cast: the x block is resident across h, so cast it once.
        xb_ref[...] = x_ref[...].astype(compute_dtype)

    hid = jnp.dot(xb_ref[...], w1_ref[...], preferred_element_type=jnp.float32)
    hid = jnp.maximum(hid + b1_ref[...], 0.0)
    acc_ref[...] += jnp.dot(hid.astype(compute_dtype), w2_ref[...],
                            preferred_element_type=jnp.float32)

    @pl.when(h == pl.num_programs(1) - 1)
    def _():
        # TODO(synk): dropout omitted (eval-mode identity).
        o_ref[...] = (acc_ref[...] + b2_ref[...]).astype(o_ref.dtype)


# --------------------------------------------------------------------------- #
# Tiling helpers
# --------------------------------------------------------------------------- #
def _round_up(x, m):
    return ((x + m - 1) // m) * m


def _vmem_capacity_bytes():
    try:
        info = pltpu.get_tpu_info()
        cap = getattr(info, "vmem_capacity_bytes", None)
        if cap:
            return int(cap)
    except Exception:
        pass
    return 64 * 1024 * 1024  # conservative (v7x per-TC VMEM)


def _choose_row_tile(M, per_row_bytes, fixed_bytes, budget):
    """Biggest row tile that fits the VMEM budget, multiple of 8, >= 2 tiles
    (megacore) when there is enough work, with limited padding waste."""
    M8 = _round_up(max(M, 1), 8)
    tm = 1024
    while tm > 8 and fixed_bytes + tm * per_row_bytes > budget:
        tm //= 2
    tm = _round_up(min(tm, M8), 8)
    if M8 <= 128:
        return M8
    while tm > 128 and (_round_up(M8, tm) < 2 * tm or _round_up(M8, tm) - M8 > tm // 2):
        tm = _round_up(tm // 2, 8)
    return max(_round_up(tm, 8), 8)


def _choose_streamed_tiles(M, C, H, x_bytes, o_bytes, budget):
    """(tm, th) for the streamed-hidden fallback; avoids th=128 on the MXU."""
    M8 = _round_up(max(M, 1), 8)
    for th in (2048, 1024, 512, 256):
        for tm in (512, 384, 256, 128, 64, 32, 16, 8):
            if tm > M8:
                continue
            need = (tm * C * (2 * x_bytes + 2 * o_bytes + 4 + 2)   # x/out dbl-buf, acc, x bf16
                    + 2 * (C * th * 2 + th * C * 2)                # W1/W2 tiles, double-buffered
                    + tm * th * 6                                  # hid f32 + bf16 copy
                    + 2 * (th + C) * 4                             # biases
                    + (2 << 20))                                   # internal scratch slack
            if need <= budget:
                return tm, th
    return 8, 256


# --------------------------------------------------------------------------- #
# Wrapper
# --------------------------------------------------------------------------- #
def feed_forward(x, params, *, compute_dtype=jnp.bfloat16):
    """x: (..., C).  params: dict with w1 (C,4C), b1 (4C,), w2 (4C,C), b2 (C,)."""
    orig_shape = x.shape
    C = orig_shape[-1]
    M = math.prod(orig_shape[:-1])
    x2 = x.reshape(M, C)

    # Weights as bf16 (halves weight DMA + VMEM); biases stay f32.
    w1 = params["w1"].astype(compute_dtype)
    w2 = params["w2"].astype(compute_dtype)
    b1 = params["b1"].reshape(1, -1).astype(jnp.float32)
    b2 = params["b2"].reshape(1, -1).astype(jnp.float32)
    H = w1.shape[1]

    x_bytes = jnp.dtype(x.dtype).itemsize
    o_bytes = x_bytes

    vmem_cap = _vmem_capacity_bytes()
    vmem_limit = max(32 << 20, min(int(vmem_cap * 0.85), 110 << 20))
    budget = int(vmem_limit * 0.9)

    # Resident-weight feasibility (count weights twice for buffering headroom).
    w_bytes = 2 * C * H * 2
    per_row_res = C * (2 * x_bytes + 2 * o_bytes + 2 + 4) + H * 6
    fixed_res = 2 * w_bytes + 2 * (H + C) * 4 + (2 << 20)
    resident_ok = fixed_res + 8 * per_row_res <= budget

    if resident_ok:
        # ---- Path A: weights resident in VMEM, 1-D grid over row tiles. ---- #
        tm = _choose_row_tile(M, per_row_res, fixed_res, budget)
        Mp = _round_up(M, tm)
        xp = x2 if Mp == M else jnp.pad(x2, ((0, Mp - M), (0, 0)))

        kernel = functools.partial(_ffn_resident_kernel, compute_dtype=compute_dtype)
        out = pl.pallas_call(
            kernel,
            out_shape=jax.ShapeDtypeStruct((Mp, C), x.dtype),
            grid_spec=pltpu.PrefetchScalarGridSpec(
                num_scalar_prefetch=0,
                grid=(Mp // tm,),
                in_specs=[
                    pl.BlockSpec((tm, C), lambda i: (i, 0)),   # x rows
                    pl.BlockSpec((C, H), lambda i: (0, 0)),    # W1, fetched once
                    pl.BlockSpec((1, H), lambda i: (0, 0)),    # b1
                    pl.BlockSpec((H, C), lambda i: (0, 0)),    # W2, fetched once
                    pl.BlockSpec((1, C), lambda i: (0, 0)),    # b2
                ],
                out_specs=pl.BlockSpec((tm, C), lambda i: (i, 0)),  # lane-dense output
            ),
            compiler_params=pltpu.CompilerParams(
                dimension_semantics=("parallel",),
                vmem_limit_bytes=vmem_limit,
            ),
        )(xp, w1, b1, w2, b2)
    else:
        # ---- Path B: very large C -> stream the hidden (4C) axis. ---- #
        tm, th = _choose_streamed_tiles(M, C, H, x_bytes, o_bytes, budget)
        Mp = _round_up(M, tm)
        Hp = _round_up(H, th)
        xp = x2 if Mp == M else jnp.pad(x2, ((0, Mp - M), (0, 0)))
        if Hp != H:  # zero-pad hidden dim: padded columns contribute exactly 0
            w1 = jnp.pad(w1, ((0, 0), (0, Hp - H)))
            b1 = jnp.pad(b1, ((0, 0), (0, Hp - H)))
            w2 = jnp.pad(w2, ((0, Hp - H), (0, 0)))

        kernel = functools.partial(_ffn_streamed_kernel, compute_dtype=compute_dtype)
        out = pl.pallas_call(
            kernel,
            out_shape=jax.ShapeDtypeStruct((Mp, C), x.dtype),
            grid_spec=pltpu.PrefetchScalarGridSpec(
                num_scalar_prefetch=0,
                grid=(Mp // tm, Hp // th),                      # reduction axis last
                in_specs=[
                    pl.BlockSpec((tm, C), lambda i, h: (i, 0)),
                    pl.BlockSpec((C, th), lambda i, h: (0, h)),
                    pl.BlockSpec((1, th), lambda i, h: (0, h)),
                    pl.BlockSpec((th, C), lambda i, h: (h, 0)),
                    pl.BlockSpec((1, C), lambda i, h: (0, 0)),
                ],
                out_specs=pl.BlockSpec((tm, C), lambda i, h: (i, 0)),
                scratch_shapes=[
                    pltpu.VMEM((tm, C), jnp.float32),           # f32 accumulator
                    pltpu.VMEM((tm, C), compute_dtype),         # hoisted bf16 x tile
                ],
            ),
            compiler_params=pltpu.CompilerParams(
                dimension_semantics=("parallel", "arbitrary"),
                vmem_limit_bytes=vmem_limit,
            ),
        )(xp, w1, b1, w2, b2)

    if Mp != M:
        out = out[:M]
    return out.reshape(orig_shape)


# --------------------------------------------------------------------------- #
# Params / reference / self-test
# --------------------------------------------------------------------------- #
def init_params(key, n_embd):
    """Synthetic weights matching nn.Linear shapes, stored as (in, out) so the
    kernel computes x @ W (PyTorch stores (out, in) and computes x @ W.T)."""
    C = n_embd
    k1, k2, k3, k4 = jax.random.split(key, 4)
    s1 = 1.0 / math.sqrt(C)
    s2 = 1.0 / math.sqrt(4 * C)
    return {
        "w1": s1 * jax.random.normal(k1, (C, 4 * C), jnp.float32),
        "b1": s1 * jax.random.normal(k2, (4 * C,), jnp.float32),
        "w2": s2 * jax.random.normal(k3, (4 * C, C), jnp.float32),
        "b2": s2 * jax.random.normal(k4, (C,), jnp.float32),
    }


def _reference(x, p):
    """Pure-JAX f32 reference replicating the PyTorch forward (dropout = identity)."""
    h = jnp.maximum(x @ p["w1"] + p["b1"], 0.0)
    return h @ p["w2"] + p["b2"]


if __name__ == "__main__":
    key = jax.random.PRNGKey(0)
    kx, kp, kx2, kp2 = jax.random.split(key, 4)

    # Small module-scale shape: n_embd=32 -> hidden=128.
    B, T, C = 2, 8, 32
    x = jax.random.normal(kx, (B, T, C), jnp.float32)
    params = init_params(kp, C)
    out = jax.block_until_ready(feed_forward(x, params))
    ref = _reference(x, params)
    assert out.shape == (B, T, C)
    assert jnp.allclose(out, ref, atol=3e-2, rtol=3e-2), "small-shape mismatch"

    # Production-ish tiling path: lane-dense C=256, M=1024 -> multiple row tiles.
    B2, T2, C2 = 4, 256, 256
    x_big = jax.random.normal(kx2, (B2, T2, C2), jnp.float32)
    params_big = init_params(kp2, C2)
    out_big = jax.block_until_ready(feed_forward(x_big, params_big))
    ref_big = _reference(x_big, params_big)
    assert out_big.shape == (B2, T2, C2)
    assert jnp.allclose(out_big, ref_big, atol=5e-2, rtol=5e-2), "large-shape mismatch"

    print("KERNEL_OK")
</pallas_src>

<mosaic_0001>
module attributes {stable_mosaic.version = 11 : i64} {
  func.func @_ffn_resident_kernel(%arg0: i32, %arg1: memref<16x32xf32, #tpu.memory_space<vmem>>, %arg2: memref<32x128xbf16, #tpu.memory_space<vmem>>, %arg3: memref<1x128xf32, #tpu.memory_space<vmem>>, %arg4: memref<128x32xbf16, #tpu.memory_space<vmem>>, %arg5: memref<1x32xf32, #tpu.memory_space<vmem>>, %arg6: memref<16x32xf32, #tpu.memory_space<vmem>>) attributes {dimension_semantics = [#tpu.dimension_semantics<parallel>], iteration_bounds = array<i64: 1>, scalar_prefetch = 0 : i64, scratch_operands = 0 : i64, tpu.core_type = #tpu.core_type<tc>, window_params = [{transform_indices = @transform_0, window_bounds = array<i64: 16, 32>}, {pipeline_mode = #tpu.pipeline_mode<synchronous>, transform_indices = @transform_1, window_bounds = array<i64: 32, 128>}, {pipeline_mode = #tpu.pipeline_mode<synchronous>, transform_indices = @transform_2, window_bounds = array<i64: 1, 128>}, {pipeline_mode = #tpu.pipeline_mode<synchronous>, transform_indices = @transform_3, window_bounds = array<i64: 128, 32>}, {pipeline_mode = #tpu.pipeline_mode<synchronous>, transform_indices = @transform_4, window_bounds = array<i64: 1, 32>}, {transform_indices = @transform_5, window_bounds = array<i64: 16, 32>}]} {
    %c0 = arith.constant 0 : index
    %c0_0 = arith.constant 0 : index
    %0 = vector.load %arg1[%c0, %c0_0] : memref<16x32xf32, #tpu.memory_space<vmem>>, vector<16x32xf32>
    %1 = arith.truncf %0 : vector<16x32xf32> to vector<16x32xbf16>
    %c0_1 = arith.constant 0 : index
    %c0_2 = arith.constant 0 : index
    %2 = vector.load %arg2[%c0_1, %c0_2] : memref<32x128xbf16, #tpu.memory_space<vmem>>, vector<32x128xbf16>
    %cst = arith.constant dense<0.000000e+00> : vector<16x128xf32>
    %3 = tpu.matmul %1, %2, %cst {dimension_numbers = #tpu.dot_dimension_numbers<[1], [0], [0], [1], [0, 0, 1, 1], [], []>} : vector<16x32xbf16>, vector<32x128xbf16>, vector<16x128xf32> -> vector<16x128xf32>
    %c0_3 = arith.constant 0 : index
    %c0_4 = arith.constant 0 : index
    %4 = vector.load %arg3[%c0_3, %c0_4] : memref<1x128xf32, #tpu.memory_space<vmem>>, vector<1x128xf32>
    %5 = vector.broadcast %4 : vector<1x128xf32> to vector<16x128xf32>
    %6 = arith.addf %3, %5 : vector<16x128xf32>
    %cst_5 = arith.constant 0.000000e+00 : f32
    %7 = vector.broadcast %cst_5 : f32 to vector<16x128xf32>
    %8 = arith.maximumf %6, %7 : vector<16x128xf32>
    %9 = arith.truncf %8 : vector<16x128xf32> to vector<16x128xbf16>
    %c0_6 = arith.constant 0 : index
    %c0_7 = arith.constant 0 : index
    %10 = vector.load %arg4[%c0_6, %c0_7] : memref<128x32xbf16, #tpu.memory_space<vmem>>, vector<128x32xbf16>
    %cst_8 = arith.constant dense<0.000000e+00> : vector<16x32xf32>
    %11 = tpu.matmul %9, %10, %cst_8 {dimension_numbers = #tpu.dot_dimension_numbers<[1], [0], [0], [1], [0, 0, 1, 1], [], []>} : vector<16x128xbf16>, vector<128x32xbf16>, vector<16x32xf32> -> vector<16x32xf32>
    %c0_9 = arith.constant 0 : index
    %c0_10 = arith.constant 0 : index
    %12 = vector.load %arg5[%c0_9, %c0_10] : memref<1x32xf32, #tpu.memory_space<vmem>>, vector<1x32xf32>
    %13 = vector.broadcast %12 : vector<1x32xf32> to vector<16x32xf32>
    %14 = arith.addf %11, %13 : vector<16x32xf32>
    %c0_11 = arith.constant 0 : index
    %c0_12 = arith.constant 0 : index
    %15 = vector.load %arg6[%c0_11, %c0_12] : memref<16x32xf32, #tpu.memory_space<vmem>>, vector<16x32xf32>
    tpu.vector_store %arg6[%c0_11, %c0_12], %14 {strides = array<i32>} : memref<16x32xf32, #tpu.memory_space<vmem>>, vector<16x32xf32>,
    return
  }
  func.func @transform_0(%arg0: i32) -> (i32, i32) {
    %c0_i32 = arith.constant 0 : i32
    %c0_i32_0 = arith.constant 0 : i32
    return %arg0, %c0_i32 : i32, i32
  }
  func.func @transform_1(%arg0: i32) -> (i32, i32) {
    %c0_i32 = arith.constant 0 : i32
    %c0_i32_0 = arith.constant 0 : i32
    %c0_i32_1 = arith.constant 0 : i32
    return %c0_i32, %c0_i32_0 : i32, i32
  }
  func.func @transform_2(%arg0: i32) -> (i32, i32) {
    %c0_i32 = arith.constant 0 : i32
    %c0_i32_0 = arith.constant 0 : i32
    %c0_i32_1 = arith.constant 0 : i32
    return %c0_i32, %c0_i32_0 : i32, i32
  }
  func.func @transform_3(%arg0: i32) -> (i32, i32) {
    %c0_i32 = arith.constant 0 : i32
    %c0_i32_0 = arith.constant 0 : i32
    %c0_i32_1 = arith.constant 0 : i32
    return %c0_i32, %c0_i32_0 : i32, i32
  }
  func.func @transform_4(%arg0: i32) -> (i32, i32) {
    %c0_i32 = arith.constant 0 : i32
    %c0_i32_0 = arith.constant 0 : i32
    %c0_i32_1 = arith.constant 0 : i32
    return %c0_i32, %c0_i32_0 : i32, i32
  }
  func.func @transform_5(%arg0: i32) -> (i32, i32) {
    %c0_i32 = arith.constant 0 : i32
    %c0_i32_0 = arith.constant 0 : i32
    return %arg0, %c0_i32 : i32, i32
  }
}

</mosaic_0001>

<llo_original>
// kernel: tpu_custom_call.1
$region0: #{tpu_custom_call.1}
  #allocation0 [shape = 'u32[]', space=smem, size = 0x4, offset = 0x4, fixed_abs, tag = 'smem constant byte address 0x4 - core index']
  #allocation1 [shape = 'u32[144,128]{1,0:T(1,128)}', space=vmem, size = 0x12000, scoped, tag = 'internal scratch']
  %s0 = inlined_call_operand.vmem [shape: f32[16,32], index: 0, kind: input, shape index: {}]
  %s1 = inlined_call_operand.vmem [shape: bf16[32,128], index: 1, kind: input, shape index: {}]
  %s2 = inlined_call_operand.vmem [shape: f32[1,128], index: 2, kind: input, shape index: {}]
  %s3 = inlined_call_operand.vmem [shape: bf16[128,32], index: 3, kind: input, shape index: {}]
  %s4 = inlined_call_operand.vmem [shape: f32[1,32], index: 4, kind: input, shape index: {}]
  %s5 = inlined_call_operand.hbm [shape: f32[16,32], index: 5, kind: output, shape index: {}]
  %s6 = sld [smem:[#allocation0]]
  $region30: #{tpu_custom_call.1} parent=0
    _
  %s8 = ssub.s32 1, %s6
  %s9 = scalar_select 0, %s8, %s6
  $region1: #{tpu_custom_call.1} parent=0
    #allocation2 [shape = 'u8[8192]{0}', space=vmem, size = 0x2000, scoped, tag = 'output window, operand 0, single buffered']
    #allocation3 [shape = 's32[1]{0}', space=sflag, size = 0x4, scoped, tag = 'scoped memory for tpu_custom_call.1']
    %10 = vsyncpa [#allocation3], 0
    // Predicated region
    $region2: #{tpu_custom_call.1} parent=1 // pred_check
      _
    $region3: #{tpu_custom_call.1} parent=1 // pred_check_branch
      %12 = sbr.rel (0) target = $region5
    $region4: #{tpu_custom_call.1} parent=1 // pred_region
      _
    $region5: #{tpu_custom_call.1} parent=1 // pred_fallthru
      _
    // Predicated region
    $region6: #{tpu_custom_call.1} parent=1 // pred_check
      _
    $region7: #{tpu_custom_call.1} parent=1 // pred_check_branch
      %14 = sbr.rel (0) target = $region9
    $region8: #{tpu_custom_call.1} parent=1 // pred_region
      _
    $region9: #{tpu_custom_call.1} parent=1 // pred_fallthru
      _
    // Predicated region
    $region10: #{tpu_custom_call.1} parent=1 // pred_check
      _
    $region11: #{tpu_custom_call.1} parent=1 // pred_check_branch
      %16 = sbr.rel (0) target = $region13
    $region12: #{tpu_custom_call.1} parent=1 // pred_region
      _
    $region13: #{tpu_custom_call.1} parent=1 // pred_fallthru
      _
    // Predicated region
    $region14: #{tpu_custom_call.1} parent=1 // pred_check
      _
    $region15: #{tpu_custom_call.1} parent=1 // pred_check_branch
      %18 = sbr.rel (0) target = $region17
    $region16: #{tpu_custom_call.1} parent=1 // pred_region
      _
    $region17: #{tpu_custom_call.1} parent=1 // pred_fallthru
      _
    // Predicated region
    $region18: #{tpu_custom_call.1} parent=1 // pred_check
      _
    $region19: #{tpu_custom_call.1} parent=1 // pred_check_branch
      %20 = sbr.rel (0) target = $region21
    $region20: #{tpu_custom_call.1} parent=1 // pred_region
      _
    $region21: #{tpu_custom_call.1} parent=1 // pred_fallthru
      _
    %v22 = vld [vmem:[%s0] sm:$0xff]
    %v23 = vld [vmem:[%s0 + $0x8] sm:$0xff]
    %v24 = vpack.c.bf16 %v23, %v22
    %v25 = vld [vmem:[%s1] sm:$0xf]
    %v26 = vld [vmem:[%s1 + $0x4] sm:$0xf]
    %v27 = vld [vmem:[%s1 + $0x8] sm:$0xf]
    %v28 = vld [vmem:[%s1 + $0xc] sm:$0xf]
    %v29 = vld [vmem:[%s2] sm:$0x1]
    %v31 = vlaneseq
    %v32 = vshrl.u32 %v31, 7
    %v33 = vsub.s32 0, %v32
    %v34 = vrot.slane %v29, %v33
    %v40 = vunpack.c.l.b16 %v25
    %v41 = vunpack.c.l.b16 %v26
    %v42 = vunpack.c.l.b16 %v27
    %v43 = vunpack.c.l.b16 %v28
    %v44 = vpack.c.b16 %v41, %v40
    %v45 = vpack.c.b16 %v43, %v42
    %vm48 = vcmask 261120
    %v50 = vsel %vm48, %v24, 0
    %52 = vmatprep.subr.bf16.mxu0 0
    %53 = vmatpush1.bf16.msra.mxu0 %v44
    %54 = vmatprep.subr.bf16.mxu0 0
    %55 = vmatpush1.bf16.msra.mxu0 %v45
    %56 = vmatprep.subr.bf16.mxu0 0
    %57 = vmatpush1.bf16.msra.mxu0 0
    %58 = vmatprep.subr.bf16.mxu0 0
    %59 = vmatpush1.bf16.msra.mxu0 0
    %60 = vmatprep.subr.bf16.mxu0 0
    %61 = vmatpush1.bf16.msra.mxu0 0
    %62 = vmatprep.subr.bf16.mxu0 0
    %63 = vmatpush1.bf16.msra.mxu0 0
    %64 = vmatprep.subr.bf16.mxu0 0
    %65 = vmatpush1.bf16.msra.mxu0 0
    %66 = vmatprep.subr.bf16.mxu0 0
    %67 = vmatpush1.bf16.msra.mxu0 0
    %68 = vmatprep.subr.bf16.mxu0 0
    %69 = vmatpush1.bf16.msra.mxu0 0
    %70 = vmatprep.subr.bf16.mxu0 0
    %71 = vmatpush1.bf16.msra.mxu0 0
    %72 = vmatprep.subr.bf16.mxu0 0
    %73 = vmatpush1.bf16.msra.mxu0 0
    %74 = vmatprep.subr.bf16.mxu0 0
    %75 = vmatpush1.bf16.msra.mxu0 0
    %76 = vmatprep.subr.bf16.mxu0 0
    %77 = vmatpush1.bf16.msra.mxu0 0
    %78 = vmatprep.subr.bf16.mxu0 0
    %79 = vmatpush1.bf16.msra.mxu0 0
    %80 = vmatprep.subr.bf16.mxu0 0
    %81 = vmatpush1.bf16.msra.mxu0 0
    %82 = vmatprep.subr.bf16.mxu0 0
    %83 = vmatpush1.bf16.msra.mxu0 0
    %84 = vmatprep.mubr.bf16.mxu0 0
    %85 = vmatmul.mubr.bf16.gmra.mrb[0].mxu0 %v50
    %v86 = vpop.f32.mrb[0].mxu0
    %v87 = vadd.f32 %v34, %v86
    %v88 = vpop.f32.mrb[0].mxu0
    %v89 = vpop.f32.mrb[0].mxu0
    %v90 = vadd.f32 %v34, %v89
    %v91 = vpop.f32.mrb[0].mxu0
    %92 = vdwg.mxu0
    %v93 = vmax.f32 %v87, 0.0
    %v94 = vmax.f32 %v90, 0.0
    %v95 = vpack.c.bf16 %v94, %v93
    %v96 = vld [vmem:[%s3] sm:$0xf]
    %v97 = vld [vmem:[%s3 + $0x4] sm:$0xf]
    %v98 = vld [vmem:[%s3 + $0x8] sm:$0xf]
    %v99 = vld [vmem:[%s3 + $0xc] sm:$0xf]
    %v100 = vld [vmem:[%s3 + $0x10] sm:$0xf]
    %v101 = vld [vmem:[%s3 + $0x14] sm:$0xf]
    %v102 = vld [vmem:[%s3 + $0x18] sm:$0xf]
    %v103 = vld [vmem:[%s3 + $0x1c] sm:$0xf]
    %v104 = vld [vmem:[%s3 + $0x20] sm:$0xf]
    %v105 = vld [vmem:[%s3 + $0x24] sm:$0xf]
    %v106 = vld [vmem:[%s3 + $0x28] sm:$0xf]
    %v107 = vld [vmem:[%s3 + $0x2c] sm:$0xf]
    %v108 = vld [vmem:[%s3 + $0x30] sm:$0xf]
    %v109 = vld [vmem:[%s3 + $0x34] sm:$0xf]
    %v110 = vld [vmem:[%s3 + $0x38] sm:$0xf]
    %v111 = vld [vmem:[%s3 + $0x3c] sm:$0xf]
    %v112 = vld [vmem:[%s4] sm:$0x1]
    %v114 = vlaneseq
    %v115 = vshrl.u32 %v114, 7
    %v116 = vsub.s32 0, %v115
    %v117 = vrot.slane %v112, %v116
    %v135 = vunpack.c.l.b16 %v96
    %v136 = vunpack.c.l.b16 %v97
    %v137 = vunpack.c.l.b16 %v98
    %v138 = vunpack.c.l.b16 %v99
    %v139 = vunpack.c.l.b16 %v100
    %v140 = vunpack.c.l.b16 %v101
    %v141 = vunpack.c.l.b16 %v102
    %v142 = vunpack.c.l.b16 %v103
    %v143 = vunpack.c.l.b16 %v104
    %v144 = vunpack.c.l.b16 %v105
    %v145 = vunpack.c.l.b16 %v106
    %v146 = vunpack.c.l.b16 %v107
    %v147 = vunpack.c.l.b16 %v108
    %v148 = vunpack.c.l.b16 %v109
    %v149 = vunpack.c.l.b16 %v110
    %v150 = vunpack.c.l.b16 %v111
    %v151 = vpack.c.b16 %v136, %v135
    %v152 = vpack.c.b16 %v138, %v137
    %v153 = vpack.c.b16 %v140, %v139
    %v154 = vpack.c.b16 %v142, %v141
    %v155 = vpack.c.b16 %v144, %v143
    %v156 = vpack.c.b16 %v146, %v145
    %v157 = vpack.c.b16 %v148, %v147
    %v158 = vpack.c.b16 %v150, %v149
    %167 = vmatprep.subr.bf16.mxu0 0
    %168 = vmatpush1.bf16.msra.mxu0 %v151
    %169 = vmatprep.subr.bf16.mxu0 0
    %170 = vmatpush1.bf16.msra.mxu0 %v152
    %171 = vmatprep.subr.bf16.mxu0 0
    %172 = vmatpush1.bf16.msra.mxu0 %v153
    %173 = vmatprep.subr.bf16.mxu0 0
    %174 = vmatpush1.bf16.msra.mxu0 %v154
    %175 = vmatprep.subr.bf16.mxu0 0
    %176 = vmatpush1.bf16.msra.mxu0 %v155
    %177 = vmatprep.subr.bf16.mxu0 0
    %178 = vmatpush1.bf16.msra.mxu0 %v156
    %179 = vmatprep.subr.bf16.mxu0 0
    %180 = vmatpush1.bf16.msra.mxu0 %v157
    %181 = vmatprep.subr.bf16.mxu0 0
    %182 = vmatpush1.bf16.msra.mxu0 %v158
    %183 = vmatprep.subr.bf16.mxu0 0
    %184 = vmatpush1.bf16.msra.mxu0 0
    %185 = vmatprep.subr.bf16.mxu0 0
    %186 = vmatpush1.bf16.msra.mxu0 0
    %187 = vmatprep.subr.bf16.mxu0 0
    %188 = vmatpush1.bf16.msra.mxu0 0
    %189 = vmatprep.subr.bf16.mxu0 0
    %190 = vmatpush1.bf16.msra.mxu0 0
    %191 = vmatprep.subr.bf16.mxu0 0
    %192 = vmatpush1.bf16.msra.mxu0 0
    %193 = vmatprep.subr.bf16.mxu0 0
    %194 = vmatpush1.bf16.msra.mxu0 0
    %195 = vmatprep.subr.bf16.mxu0 0
    %196 = vmatpush1.bf16.msra.mxu0 0
    %197 = vmatprep.subr.bf16.mxu0 0
    %198 = vmatpush1.bf16.msra.mxu0 0
    %199 = vmatprep.mubr.bf16.mxu0 0
    %200 = vmatmul.mubr.bf16.gmra.mrb[0].mxu0 %v95
    %v201 = vpop.f32.mrb[0].mxu0
    %v202 = vadd.f32 %v117, %v201
    %v203 = vpop.f32.mrb[0].mxu0
    %v204 = vpop.f32.mrb[0].mxu0
    %v205 = vadd.f32 %v117, %v204
    %v206 = vpop.f32.mrb[0].mxu0
    %207 = vdwg.mxu0
    %208 = vst.msk [vmem:[#allocation2] sm:$0xff] %vm48, %v202
    %209 = vst.msk [vmem:[#allocation2 + $0x8] sm:$0xff] %vm48, %v205
    // Predicated region
    $region22: #{tpu_custom_call.1} parent=1 // pred_check
      _
    $region23: #{tpu_custom_call.1} parent=1 // pred_check_branch
      %211 = sbr.rel (0) target = $region25
    $region24: #{tpu_custom_call.1} parent=1 // pred_region
      %s213 = ssub.s32 256, 256
      %214 = vsyncadd [#allocation3], %s213
      %s215 = sshll.u32 [#allocation2], 4
      %s216 = int_to_ptr.vmem [resolvable:$true] %s215
      %221 = dma.vmem_to_hbm [thread:$0]  %s216, 256, %s5, [#allocation3], 128, 128, 8
    $region25: #{tpu_custom_call.1} parent=1 // pred_fallthru
      _
    // Predicated region
    $region26: #{tpu_custom_call.1} parent=1 // pred_check
      _
    $region27: #{tpu_custom_call.1} parent=1 // pred_check_branch
      %223 = sbr.rel (0) target = $region29
    $region28: #{tpu_custom_call.1} parent=1 // pred_region
      %224 = dma.done [#allocation3], 256
    $region29: #{tpu_custom_call.1} parent=1 // pred_fallthru
      _
    %225 = vsyncpa [#allocation3], 1

</llo_original>
